<compile_context>
chip_gen: v5e
topology: v5e:2x2
jax: 0.10.0
libtpu: 0.0.40
codegen_flags: <defaults>
</compile_context>

<pallas_src>
import functools

import jax
import jax.numpy as jnp
from jax import lax
from jax.experimental import pallas as pl
from jax.experimental.pallas import tpu as pltpu


def mlp_kernel(xt_ref, w1t_ref, b1t_ref, w2t_ref, b2t_ref, w3t_ref, b3_ref, ot_ref,
               *, chunk):
    # Tiny resident parameters (constant index_map -> fetched once, reused per step).
    w1t = w1t_ref[...]   # (64, 1)
    b1t = b1t_ref[...]   # (64, 1)
    w2t = w2t_ref[...]   # (64, 64)
    b2t = b2t_ref[...]   # (64, 1)
    w3t = w3t_ref[...]   # (1, 64)
    b3 = b3_ref[...]     # (1, 1)

    tn = ot_ref.shape[-1]
    n_chunks = tn // chunk   # static (wrapper guarantees tn % chunk == 0)

    # Inner chunk loop: bounds the live set (h1/h2 each <= 32 vregs at chunk=512)
    # while the large grid tile amortizes per-step pipeline overhead.
    @pl.loop(0, n_chunks)
    def _(c):
        off = pl.multiple_of(c * chunk, chunk)
        x = xt_ref[:, pl.ds(off, chunk)]                               # (1, chunk)

        # Layer 1 (1 -> 64): K=1 contraction == outer product; VPU broadcast FMA
        # (an MXU matmul here would pay push/pop latency for ~zero useful MACs).
        h1 = jnp.maximum(w1t * x + b1t, 0.0)                           # (64, chunk)

        # Layer 2 (64 -> 64): MXU matmul, lane-dense result, full-f32 accumulation.
        h2 = jnp.dot(w2t, h1, preferred_element_type=jnp.float32,
                     precision=lax.Precision.HIGHEST)                  # (64, chunk)
        h2 = jnp.maximum(h2 + b2t, 0.0)

        # Layer 3 (64 -> 1): (1,64) @ (64,chunk) -> lane-dense (1, chunk) row.
        out = jnp.dot(w3t, h2, preferred_element_type=jnp.float32,
                      precision=lax.Precision.HIGHEST)                 # (1, chunk)
        ot_ref[:, pl.ds(off, chunk)] = (out + b3).astype(ot_ref.dtype)


def regression_model_forward(x, params, *, tn=4096, chunk=512):
    """x: (N, 1) f32. params: w1 (1,64), b1 (1,64), w2 (64,64), b2 (1,64), w3 (64,1), b3 (1,1)."""
    n = x.shape[0]

    # Batch-on-lanes layout: (N, 1) -> (1, N) is a contiguous reshape (no HBM pass).
    xt = x.reshape(1, n)

    # Transpose params once (tiny).
    w1t = params["w1"].T          # (64, 1)
    b1t = params["b1"].T          # (64, 1)
    w2t = params["w2"].T          # (64, 64)
    b2t = params["b2"].T          # (64, 1)
    w3t = params["w3"].T          # (1, 64)
    b3 = params["b3"]             # (1, 1)

    # Tile selection:
    #   * multiple of 128 lanes,
    #   * capped at ~half the batch so >= 2 grid steps exist (v7x's two TensorCores),
    #   * a multiple of the inner chunk so the chunk loop needs no tail handling.
    half = max(128, (pl.cdiv(n, 2) // 128) * 128)
    tn = max(128, min(tn, half))
    chunk = min(chunk, tn)
    tn = (tn // chunk) * chunk
    assert tn % 128 == 0 and chunk % 128 == 0 and tn % chunk == 0

    grid = (pl.cdiv(n, tn),)      # partial last block -> Pallas boundary masking
    full = lambda a: pl.BlockSpec(a.shape, lambda i: (0,) * a.ndim)

    ot = pl.pallas_call(
        functools.partial(mlp_kernel, chunk=chunk),
        out_shape=jax.ShapeDtypeStruct((1, n), jnp.float32),
        grid_spec=pltpu.PrefetchScalarGridSpec(
            num_scalar_prefetch=0,
            grid=grid,
            in_specs=[
                pl.BlockSpec((1, tn), lambda i: (0, i)),   # x tile (lane-dense)
                full(w1t), full(b1t),
                full(w2t), full(b2t),
                full(w3t), full(b3),
            ],
            out_specs=pl.BlockSpec((1, tn), lambda i: (0, i)),
        ),
        compiler_params=pltpu.CompilerParams(
            dimension_semantics=("parallel",),      # batch axis shards across TCs (v7x)
            vmem_limit_bytes=32 * 1024 * 1024,      # safe common denominator (v7x: 64 MiB phys)
        ),
    )(xt, w1t, b1t, w2t, b2t, w3t, b3)

    return ot.reshape(n, 1)                          # back to (N, 1), contiguous reshape


def init_params(key):
    """Deterministic init mirroring PyTorch's default Linear init:
    U(-1/sqrt(fan_in), 1/sqrt(fan_in)) for both weight and bias.
    Weights stored as (in_features, out_features), biases as (1, out_features)."""
    def linear(key, fan_in, fan_out):
        kw, kb = jax.random.split(key)
        bound = 1.0 / jnp.sqrt(jnp.float32(fan_in))
        w = jax.random.uniform(kw, (fan_in, fan_out), jnp.float32, -bound, bound)
        b = jax.random.uniform(kb, (1, fan_out), jnp.float32, -bound, bound)
        return w, b

    k1, k2, k3 = jax.random.split(key, 3)
    w1, b1 = linear(k1, 1, 64)
    w2, b2 = linear(k2, 64, 64)
    w3, b3 = linear(k3, 64, 1)
    return {"w1": w1, "b1": b1, "w2": w2, "b2": b2, "w3": w3, "b3": b3}


if __name__ == "__main__":
    key = jax.random.PRNGKey(0)
    pkey, xkey = jax.random.split(key)
    params = init_params(pkey)

    # Non-multiple batch exercises the boundary-masked last block; tile-cap logic
    # ensures >= 2 grid steps (tn becomes 128 here -> 4 grid steps).
    N = 500
    x = jax.random.normal(xkey, (N, 1), jnp.float32)

    out = regression_model_forward(x, params)
    out = jax.block_until_ready(out)

    # Reference check in plain JAX (same math, no Pallas). Layer 1 written as the
    # equivalent broadcast (x @ w1 with K=1 == x * w1) to match exact-f32 semantics.
    h1 = jnp.maximum(x * params["w1"] + params["b1"], 0.0)
    h2 = jnp.maximum(h1 @ params["w2"] + params["b2"], 0.0)
    ref = h2 @ params["w3"] + params["b3"]

    assert out.shape == (N, 1)
    assert jnp.allclose(out, ref, atol=5e-5, rtol=5e-5), float(jnp.max(jnp.abs(out - ref)))

    print("KERNEL_OK")
</pallas_src>

<mosaic_0001>
module attributes {stable_mosaic.version = 11 : i64} {
  func.func @mlp_kernel(%arg0: i32, %arg1: memref<1x128xf32, #tpu.memory_space<vmem>>, %arg2: memref<64x1xf32, #tpu.memory_space<vmem>>, %arg3: memref<64x1xf32, #tpu.memory_space<vmem>>, %arg4: memref<64x64xf32, #tpu.memory_space<vmem>>, %arg5: memref<64x1xf32, #tpu.memory_space<vmem>>, %arg6: memref<1x64xf32, #tpu.memory_space<vmem>>, %arg7: memref<1x1xf32, #tpu.memory_space<vmem>>, %arg8: memref<1x128xf32, #tpu.memory_space<vmem>>) attributes {dimension_semantics = [#tpu.dimension_semantics<parallel>], iteration_bounds = array<i64: 4>, scalar_prefetch = 0 : i64, scratch_operands = 0 : i64, tpu.core_type = #tpu.core_type<tc>, window_params = [{transform_indices = @transform_0, window_bounds = array<i64: 1, 128>}, {pipeline_mode = #tpu.pipeline_mode<synchronous>, transform_indices = @transform_1, window_bounds = array<i64: 64, 1>}, {pipeline_mode = #tpu.pipeline_mode<synchronous>, transform_indices = @transform_2, window_bounds = array<i64: 64, 1>}, {pipeline_mode = #tpu.pipeline_mode<synchronous>, transform_indices = @transform_3, window_bounds = array<i64: 64, 64>}, {pipeline_mode = #tpu.pipeline_mode<synchronous>, transform_indices = @transform_4, window_bounds = array<i64: 64, 1>}, {pipeline_mode = #tpu.pipeline_mode<synchronous>, transform_indices = @transform_5, window_bounds = array<i64: 1, 64>}, {pipeline_mode = #tpu.pipeline_mode<synchronous>, transform_indices = @transform_6, window_bounds = array<i64: 1, 1>}, {transform_indices = @transform_7, window_bounds = array<i64: 1, 128>}]} {
    %c0 = arith.constant 0 : index
    %c0_0 = arith.constant 0 : index
    %0 = vector.load %arg2[%c0, %c0_0] : memref<64x1xf32, #tpu.memory_space<vmem>>, vector<64x1xf32>
    %c0_1 = arith.constant 0 : index
    %c0_2 = arith.constant 0 : index
    %1 = vector.load %arg3[%c0_1, %c0_2] : memref<64x1xf32, #tpu.memory_space<vmem>>, vector<64x1xf32>
    %c0_3 = arith.constant 0 : index
    %c0_4 = arith.constant 0 : index
    %2 = vector.load %arg4[%c0_3, %c0_4] : memref<64x64xf32, #tpu.memory_space<vmem>>, vector<64x64xf32>
    %c0_5 = arith.constant 0 : index
    %c0_6 = arith.constant 0 : index
    %3 = vector.load %arg5[%c0_5, %c0_6] : memref<64x1xf32, #tpu.memory_space<vmem>>, vector<64x1xf32>
    %c0_7 = arith.constant 0 : index
    %c0_8 = arith.constant 0 : index
    %4 = vector.load %arg6[%c0_7, %c0_8] : memref<1x64xf32, #tpu.memory_space<vmem>>, vector<1x64xf32>
    %c0_9 = arith.constant 0 : index
    %c0_10 = arith.constant 0 : index
    %5 = vector.load %arg7[%c0_9, %c0_10] : memref<1x1xf32, #tpu.memory_space<vmem>>, vector<1x1xf32>
    %c0_i32 = arith.constant 0 : i32
    %c1_i32 = arith.constant 1 : i32
    %6 = arith.muli %c0_i32, %c1_i32 : i32
    %c0_i32_11 = arith.constant 0 : i32
    %7 = arith.addi %c0_i32_11, %6 : i32
    %c128_i32 = arith.constant 128 : i32
    %8 = arith.muli %7, %c128_i32 : i32
    %9 = tpu.assume_multiple %8, 128 : i32
    %c0_12 = arith.constant 0 : index
    %10 = arith.index_cast %9 : i32 to index
    %11 = vector.load %arg1[%c0_12, %10] : memref<1x128xf32, #tpu.memory_space<vmem>>, vector<1x128xf32>
    %12 = vector.broadcast %0 : vector<64x1xf32> to vector<64x128xf32>
    %13 = vector.broadcast %11 : vector<1x128xf32> to vector<64x128xf32>
    %14 = arith.mulf %12, %13 : vector<64x128xf32>
    %15 = vector.broadcast %1 : vector<64x1xf32> to vector<64x128xf32>
    %16 = arith.addf %14, %15 : vector<64x128xf32>
    %cst = arith.constant 0.000000e+00 : f32
    %17 = vector.broadcast %cst : f32 to vector<64x128xf32>
    %18 = arith.maximumf %16, %17 : vector<64x128xf32>
    %cst_13 = arith.constant dense<0.000000e+00> : vector<64x128xf32>
    %19 = tpu.matmul %2, %18, %cst_13 {dimension_numbers = #tpu.dot_dimension_numbers<[1], [0], [0], [1], [0, 0, 1, 1], [], []>, precision = #tpu.contract_precision<fp32>} : vector<64x64xf32>, vector<64x128xf32>, vector<64x128xf32> -> vector<64x128xf32>
    %20 = vector.broadcast %3 : vector<64x1xf32> to vector<64x128xf32>
    %21 = arith.addf %19, %20 : vector<64x128xf32>
    %cst_14 = arith.constant 0.000000e+00 : f32
    %22 = vector.broadcast %cst_14 : f32 to vector<64x128xf32>
    %23 = arith.maximumf %21, %22 : vector<64x128xf32>
    %cst_15 = arith.constant dense<0.000000e+00> : vector<1x128xf32>
    %24 = tpu.matmul %4, %23, %cst_15 {dimension_numbers = #tpu.dot_dimension_numbers<[1], [0], [0], [1], [0, 0, 1, 1], [], []>, precision = #tpu.contract_precision<fp32>} : vector<1x64xf32>, vector<64x128xf32>, vector<1x128xf32> -> vector<1x128xf32>
    %25 = vector.broadcast %5 : vector<1x1xf32> to vector<1x128xf32>
    %26 = arith.addf %24, %25 : vector<1x128xf32>
    %c0_16 = arith.constant 0 : index
    %27 = arith.index_cast %9 : i32 to index
    %28 = vector.load %arg8[%c0_16, %27] : memref<1x128xf32, #tpu.memory_space<vmem>>, vector<1x128xf32>
    tpu.vector_store %arg8[%c0_16, %27], %26 {strides = array<i32>} : memref<1x128xf32, #tpu.memory_space<vmem>>, vector<1x128xf32>,
    %c1_i32_17 = arith.constant 1 : i32
    return
  }
  func.func @transform_0(%arg0: i32) -> (i32, i32) {
    %c0_i32 = arith.constant 0 : i32
    %c0_i32_0 = arith.constant 0 : i32
    return %c0_i32, %arg0 : i32, i32
  }
  func.func @transform_1(%arg0: i32) -> (i32, i32) {
    %c0_i32 = arith.constant 0 : i32
    %c0_i32_0 = arith.constant 0 : i32
    %c0_i32_1 = arith.constant 0 : i32
    return %c0_i32, %c0_i32_0 : i32, i32
  }
  func.func @transform_2(%arg0: i32) -> (i32, i32) {
    %c0_i32 = arith.constant 0 : i32
    %c0_i32_0 = arith.constant 0 : i32
    %c0_i32_1 = arith.constant 0 : i32
    return %c0_i32, %c0_i32_0 : i32, i32
  }
  func.func @transform_3(%arg0: i32) -> (i32, i32) {
    %c0_i32 = arith.constant 0 : i32
    %c0_i32_0 = arith.constant 0 : i32
    %c0_i32_1 = arith.constant 0 : i32
    return %c0_i32, %c0_i32_0 : i32, i32
  }
  func.func @transform_4(%arg0: i32) -> (i32, i32) {
    %c0_i32 = arith.constant 0 : i32
    %c0_i32_0 = arith.constant 0 : i32
    %c0_i32_1 = arith.constant 0 : i32
    return %c0_i32, %c0_i32_0 : i32, i32
  }
  func.func @transform_5(%arg0: i32) -> (i32, i32) {
    %c0_i32 = arith.constant 0 : i32
    %c0_i32_0 = arith.constant 0 : i32
    %c0_i32_1 = arith.constant 0 : i32
    return %c0_i32, %c0_i32_0 : i32, i32
  }
  func.func @transform_6(%arg0: i32) -> (i32, i32) {
    %c0_i32 = arith.constant 0 : i32
    %c0_i32_0 = arith.constant 0 : i32
    %c0_i32_1 = arith.constant 0 : i32
    return %c0_i32, %c0_i32_0 : i32, i32
  }
  func.func @transform_7(%arg0: i32) -> (i32, i32) {
    %c0_i32 = arith.constant 0 : i32
    %c0_i32_0 = arith.constant 0 : i32
    return %c0_i32, %arg0 : i32, i32
  }
}

</mosaic_0001>

<llo_original>
// kernel: tpu_custom_call.1
$region0: #{tpu_custom_call.1}
  #allocation0 [shape = 'u32[]', space=smem, size = 0x4, offset = 0x4, fixed_abs, tag = 'smem constant byte address 0x4 - core index']
  #allocation1 [shape = 'u32[72,128]{1,0:T(1,128)}', space=vmem, size = 0x9000, scoped, tag = 'internal scratch']
  #allocation2 [shape = 'f32[1,1]{1,0:T(1,128)S(1)}', space=vmem, size = 0x200, scoped, tag = 'scoped memory for tpu_custom_call.1']
  %s0 = inlined_call_operand.vmem [shape: f32[1,500], index: 0, kind: input, shape index: {}]
  %s1 = inlined_call_operand.vmem [shape: f32[64,1], index: 1, kind: input, shape index: {}]
  %s2 = inlined_call_operand.vmem [shape: f32[64,1], index: 2, kind: input, shape index: {}]
  %s3 = inlined_call_operand.vmem [shape: f32[64,64], index: 3, kind: input, shape index: {}]
  %s4 = inlined_call_operand.vmem [shape: f32[64,1], index: 4, kind: input, shape index: {}]
  %s5 = inlined_call_operand.vmem [shape: f32[1,64], index: 5, kind: input, shape index: {}]
  %s6 = inlined_call_operand.<no memory space> [shape: f32[1,1], index: 6, kind: input, shape index: {}]
  %s7 = inlined_call_operand.hbm [shape: f32[1,500], index: 7, kind: output, shape index: {}]
  %s8 = sld [smem:[#allocation0]]
  $region61: #{tpu_custom_call.1} parent=0
    _
  %s10 = ssub.s32 1, %s8
  %s11 = scalar_select 0, %s10, %s8
  %v12 = vstv %s6
  %13 = vst [vmem:[#allocation2] sm:$0x1] %v12
  $region1: #{tpu_custom_call.1} parent=0
    #allocation3 [shape = 'u8[1024]{0}', space=vmem, size = 0x400, scoped, tag = 'output window, operand 0']
    #allocation4 [shape = 's32[2]{0}', space=sflag, size = 0x8, scoped, tag = 'scoped memory for tpu_custom_call.1']
    %14 = vsyncpa [#allocation4], 0
    %s15 = scalar_lea.sflag [#allocation4], 1
    %16 = vsyncpa %s15, 0
    loop: start=0, step=1, limit=6
    $region2: #{tpu_custom_call.1} parent=1 // loop_pre_header
      _
    $region3: #{tpu_custom_call.1} parent=1 // loop_header
      %s18 = sphi 0, %s22
      %p19 = scmp.ge.s32.totalorder %s18, 6
      %s28 = sphi 0, %s30
      %s31 = sphi 0, %s28
      %s32 = sphi 0, %s31
      %s48 = sphi 0, %s32
      %s52 = sphi 0, %s52
      %s54 = sphi 0, %s52
      %s55 = sphi 0, %s54
      %s69 = sphi 0, %s55
      %s73 = sphi 0, %s73
      %s75 = sphi 0, %s73
      %s76 = sphi 0, %s75
      %s90 = sphi 0, %s76
      %s94 = sphi 0, %s94
      %s96 = sphi 0, %s94
      %s97 = sphi 0, %s96
      %s111 = sphi 0, %s97
      %s115 = sphi 0, %s115
      %s117 = sphi 0, %s115
      %s118 = sphi 0, %s117
      %s132 = sphi 0, %s118
      %s136 = sphi 0, %s136
      %s138 = sphi 0, %s136
      %s139 = sphi 0, %s138
      %s153 = sphi 0, %s139
      %s157 = sphi 0, %s157
      %s159 = sphi 0, %s157
      %s160 = sphi 0, %s159
      %s174 = sphi 0, %s160
      %s180 = sphi 0, %s182
      %s183 = sphi 0, %s180
      %s184 = sphi 0, %s183
      %s200 = sphi 0, %s184
    $region4: #{tpu_custom_call.1} parent=1 // loop_header_branch
      %21 = sbr.rel (%p19) target = $region8
    $region5: #{tpu_custom_call.1} parent=1 // loop_body
      %s23 = ssub.s32 %s18, 1
      %s24 = ssub.s32 %s18, 2
      %s25 = sadd.s32 %s18, 1
      %s26 = ssub.s32 %s18, %s25
      %p27 = scmp.eq.s32.totalorder %s26, 0
      %s29 = sadd.s32 %s28, 1
      %s30 = scalar_select %p27, %s28, %s29
      %p33 = pneg %p27
      %p34 = scmp.eq.s32.totalorder %s18, 3
      %p35 = por %p33, %p34
      %p36 = scmp.ne.s32.totalorder %s28, %s31
      %p37 = scmp.eq.s32.totalorder %s18, 0
      %p38 = por %p36, %p37
      %p39 = scmp.ne.s32.totalorder %s28, %s31
      %p40 = scmp.eq.s32.totalorder %s23, 3
      %p41 = por %p39, %p40
      %p42 = scmp.ne.s32.totalorder %s31, %s32
      %p43 = scmp.eq.s32.totalorder %s23, 0
      %p44 = por %p42, %p43
      %p45 = scmp.ne.s32.totalorder %s31, %s32
      %p46 = scmp.eq.s32.totalorder %s24, 3
      %p47 = por %p45, %p46
      %p49 = scmp.ne.s32.totalorder %s32, %s48
      %p50 = scmp.eq.s32.totalorder %s24, 0
      %p51 = por %p49, %p50
      %s53 = sadd.s32 %s52, 1
      %p56 = scmp.eq.s32.totalorder %s18, 3
      %p57 = scmp.ne.s32.totalorder %s52, %s54
      %p58 = scmp.eq.s32.totalorder %s18, 0
      %p59 = por %p57, %p58
      %p60 = scmp.ne.s32.totalorder %s52, %s54
      %p61 = scmp.eq.s32.totalorder %s23, 3
      %p62 = por %p60, %p61
      %p63 = scmp.ne.s32.totalorder %s54, %s55
      %p64 = scmp.eq.s32.totalorder %s23, 0
      %p65 = por %p63, %p64
      %p66 = scmp.ne.s32.totalorder %s54, %s55
      %p67 = scmp.eq.s32.totalorder %s24, 3
      %p68 = por %p66, %p67
      %p70 = scmp.ne.s32.totalorder %s55, %s69
      %p71 = scmp.eq.s32.totalorder %s24, 0
      %p72 = por %p70, %p71
      %s74 = sadd.s32 %s73, 1
      %p77 = scmp.eq.s32.totalorder %s18, 3
      %p78 = scmp.ne.s32.totalorder %s73, %s75
      %p79 = scmp.eq.s32.totalorder %s18, 0
      %p80 = por %p78, %p79
      %p81 = scmp.ne.s32.totalorder %s73, %s75
      %p82 = scmp.eq.s32.totalorder %s23, 3
      %p83 = por %p81, %p82
      %p84 = scmp.ne.s32.totalorder %s75, %s76
      %p85 = scmp.eq.s32.totalorder %s23, 0
      %p86 = por %p84, %p85
      %p87 = scmp.ne.s32.totalorder %s75, %s76
      %p88 = scmp.eq.s32.totalorder %s24, 3
      %p89 = por %p87, %p88
      %p91 = scmp.ne.s32.totalorder %s76, %s90
      %p92 = scmp.eq.s32.totalorder %s24, 0
      %p93 = por %p91, %p92
      %s95 = sadd.s32 %s94, 1
      %p98 = scmp.eq.s32.totalorder %s18, 3
      %p99 = scmp.ne.s32.totalorder %s94, %s96
      %p100 = scmp.eq.s32.totalorder %s18, 0
      %p101 = por %p99, %p100
      %p102 = scmp.ne.s32.totalorder %s94, %s96
      %p103 = scmp.eq.s32.totalorder %s23, 3
      %p104 = por %p102, %p103
      %p105 = scmp.ne.s32.totalorder %s96, %s97
      %p106 = scmp.eq.s32.totalorder %s23, 0
      %p107 = por %p105, %p106
      %p108 = scmp.ne.s32.totalorder %s96, %s97
      %p109 = scmp.eq.s32.totalorder %s24, 3
      %p110 = por %p108, %p109
      %p112 = scmp.ne.s32.totalorder %s97, %s111
      %p113 = scmp.eq.s32.totalorder %s24, 0
      %p114 = por %p112, %p113
      %s116 = sadd.s32 %s115, 1
      %p119 = scmp.eq.s32.totalorder %s18, 3
      %p120 = scmp.ne.s32.totalorder %s115, %s117
      %p121 = scmp.eq.s32.totalorder %s18, 0
      %p122 = por %p120, %p121
      %p123 = scmp.ne.s32.totalorder %s115, %s117
      %p124 = scmp.eq.s32.totalorder %s23, 3
      %p125 = por %p123, %p124
      %p126 = scmp.ne.s32.totalorder %s117, %s118
      %p127 = scmp.eq.s32.totalorder %s23, 0
      %p128 = por %p126, %p127
      %p129 = scmp.ne.s32.totalorder %s117, %s118
      %p130 = scmp.eq.s32.totalorder %s24, 3
      %p131 = por %p129, %p130
      %p133 = scmp.ne.s32.totalorder %s118, %s132
      %p134 = scmp.eq.s32.totalorder %s24, 0
      %p135 = por %p133, %p134
      %s137 = sadd.s32 %s136, 1
      %p140 = scmp.eq.s32.totalorder %s18, 3
      %p141 = scmp.ne.s32.totalorder %s136, %s138
      %p142 = scmp.eq.s32.totalorder %s18, 0
      %p143 = por %p141, %p142
      %p144 = scmp.ne.s32.totalorder %s136, %s138
      %p145 = scmp.eq.s32.totalorder %s23, 3
      %p146 = por %p144, %p145
      %p147 = scmp.ne.s32.totalorder %s138, %s139
      %p148 = scmp.eq.s32.totalorder %s23, 0
      %p149 = por %p147, %p148
      %p150 = scmp.ne.s32.totalorder %s138, %s139
      %p151 = scmp.eq.s32.totalorder %s24, 3
      %p152 = por %p150, %p151
      %p154 = scmp.ne.s32.totalorder %s139, %s153
      %p155 = scmp.eq.s32.totalorder %s24, 0
      %p156 = por %p154, %p155
      %s158 = sadd.s32 %s157, 1
      %p161 = scmp.eq.s32.totalorder %s18, 3
      %p162 = scmp.ne.s32.totalorder %s157, %s159
      %p163 = scmp.eq.s32.totalorder %s18, 0
      %p164 = por %p162, %p163
      %p165 = scmp.ne.s32.totalorder %s157, %s159
      %p166 = scmp.eq.s32.totalorder %s23, 3
      %p167 = por %p165, %p166
      %p168 = scmp.ne.s32.totalorder %s159, %s160
      %p169 = scmp.eq.s32.totalorder %s23, 0
      %p170 = por %p168, %p169
      %p171 = scmp.ne.s32.totalorder %s159, %s160
      %p172 = scmp.eq.s32.totalorder %s24, 3
      %p173 = por %p171, %p172
      %p175 = scmp.ne.s32.totalorder %s160, %s174
      %p176 = scmp.eq.s32.totalorder %s24, 0
      %p177 = por %p175, %p176
      %s178 = ssub.s32 %s18, %s25
      %p179 = scmp.eq.s32.totalorder %s178, 0
      %s181 = sadd.s32 %s180, 1
      %s182 = scalar_select %p179, %s180, %s181
      %p185 = pneg %p179
      %p186 = scmp.eq.s32.totalorder %s18, 3
      %p187 = por %p185, %p186
      %p188 = scmp.ne.s32.totalorder %s180, %s183
      %p189 = scmp.eq.s32.totalorder %s18, 0
      %p190 = por %p188, %p189
      %p191 = scmp.ne.s32.totalorder %s180, %s183
      %p192 = scmp.eq.s32.totalorder %s23, 3
      %p193 = por %p191, %p192
      %p194 = scmp.ne.s32.totalorder %s183, %s184
      %p195 = scmp.eq.s32.totalorder %s23, 0
      %p196 = por %p194, %p195
      %p197 = scmp.ne.s32.totalorder %s183, %s184
      %p198 = scmp.eq.s32.totalorder %s24, 3
      %p199 = por %p197, %p198
      %p201 = scmp.ne.s32.totalorder %s184, %s200
      %p202 = scmp.eq.s32.totalorder %s24, 0
      %p203 = por %p201, %p202
      %p204 = scmp.le.s32.totalorder 1, %s18
      %p205 = scmp.lt.s32.totalorder %s18, 5
      %p206 = pnand %p204, %p205
      %p207 = pneg %p206
      // Predicated region
      $region9: #{tpu_custom_call.1} parent=5 // pred_check
        _
      $region10: #{tpu_custom_call.1} parent=5 // pred_check_branch
        %209 = sbr.rel (%p206) target = $region12
      $region11: #{tpu_custom_call.1} parent=5 // pred_region
        %s210 = ssub.s32 %s18, 1
        // Predicated region
        $region13: #{tpu_custom_call.1} parent=11 // pred_check
          %p211 = pneg %p65
        $region14: #{tpu_custom_call.1} parent=11 // pred_check_branch
          %213 = sbr.rel (%p211) target = $region16
        $region15: #{tpu_custom_call.1} parent=11 // pred_region
          _
        $region16: #{tpu_custom_call.1} parent=11 // pred_fallthru
          _
        // Predicated region
        $region17: #{tpu_custom_call.1} parent=11 // pred_check
          %p214 = pneg %p86
        $region18: #{tpu_custom_call.1} parent=11 // pred_check_branch
          %216 = sbr.rel (%p214) target = $region20
        $region19: #{tpu_custom_call.1} parent=11 // pred_region
          _
        $region20: #{tpu_custom_call.1} parent=11 // pred_fallthru
          _
        // Predicated region
        $region21: #{tpu_custom_call.1} parent=11 // pred_check
          %p217 = pneg %p107
        $region22: #{tpu_custom_call.1} parent=11 // pred_check_branch
          %219 = sbr.rel (%p217) target = $region24
        $region23: #{tpu_custom_call.1} parent=11 // pred_region
          _
        $region24: #{tpu_custom_call.1} parent=11 // pred_fallthru
          _
        // Predicated region
        $region25: #{tpu_custom_call.1} parent=11 // pred_check
          %p220 = pneg %p128
        $region26: #{tpu_custom_call.1} parent=11 // pred_check_branch
          %222 = sbr.rel (%p220) target = $region28
        $region27: #{tpu_custom_call.1} parent=11 // pred_region
          _
        $region28: #{tpu_custom_call.1} parent=11 // pred_fallthru
          _
        // Predicated region
        $region29: #{tpu_custom_call.1} parent=11 // pred_check
          %p223 = pneg %p149
        $region30: #{tpu_custom_call.1} parent=11 // pred_check_branch
          %225 = sbr.rel (%p223) target = $region32
        $region31: #{tpu_custom_call.1} parent=11 // pred_region
          _
        $region32: #{tpu_custom_call.1} parent=11 // pred_fallthru
          _
        // Predicated region
        $region33: #{tpu_custom_call.1} parent=11 // pred_check
          %p226 = pneg %p170
        $region34: #{tpu_custom_call.1} parent=11 // pred_check_branch
          %228 = sbr.rel (%p226) target = $region36
        $region35: #{tpu_custom_call.1} parent=11 // pred_region
          _
        $region36: #{tpu_custom_call.1} parent=11 // pred_fallthru
          _
      $region12: #{tpu_custom_call.1} parent=5 // pred_fallthru
        _
      %p229 = scmp.lt.s32.totalorder %s18, 4
      // Predicated region
      $region37: #{tpu_custom_call.1} parent=5 // pred_check
        %p230 = pneg %p229
      $region38: #{tpu_custom_call.1} parent=5 // pred_check_branch
        %232 = sbr.rel (%p230) target = $region40
      $region39: #{tpu_custom_call.1} parent=5 // pred_region
        // Predicated region
        $region41: #{tpu_custom_call.1} parent=39 // pred_check
          %p233 = pneg %p38
        $region42: #{tpu_custom_call.1} parent=39 // pred_check_branch
          %235 = sbr.rel (%p233) target = $region44
        $region43: #{tpu_custom_call.1} parent=39 // pred_region
          %p236 = scmp.lt.s32.totalorder %s18, 3
          %s237 = scalar_select %p236, %s18, 3
          %s238 = scalar_lea.vmem %s0, %s237
        $region44: #{tpu_custom_call.1} parent=39 // pred_fallthru
          _
      $region40: #{tpu_custom_call.1} parent=5 // pred_fallthru
        _
      %p239 = scmp.le.s32.totalorder 1, %s18
      %p240 = scmp.lt.s32.totalorder %s18, 5
      %p241 = pnand %p239, %p240
      %p242 = pneg %p241
      // Predicated region
      $region45: #{tpu_custom_call.1} parent=5 // pred_check
        _
      $region46: #{tpu_custom_call.1} parent=5 // pred_check_branch
        %244 = sbr.rel (%p241) target = $region48
      $region47: #{tpu_custom_call.1} parent=5 // pred_region
        %s245 = ssub.s32 %s18, 1
        %p246 = scmp.lt.s32.totalorder %s23, 3
        %s247 = scalar_select %p246, %s23, 3
        %s248 = scalar_lea.vmem %s0, %s247
        %p249 = pneg %p44
        %p250 = pneg %p41
        %p251 = pneg %p65
        %p252 = pneg %p62
        %p253 = pneg %p86
        %p254 = pneg %p83
        %p255 = pneg %p107
        %p256 = pneg %p104
        %p257 = pneg %p128
        %p258 = pneg %p125
        %p259 = pneg %p149
        %p260 = pneg %p146
        %p261 = pneg %p170
        %p262 = pneg %p167
        %p263 = pneg %p196
        %p264 = pneg %p193
        %s265 = sand.u32 %s183, 1
        %s266 = scalar_lea.sflag [#allocation4], %s265
        %s267 = sand.u32 %s183, 1
        %s268 = scalar_lea.vmem [#allocation3], %s267
        %p269 = scmp.lt.s32.totalorder %s23, 3
        %s270 = scalar_select %p269, %s23, 3
        %s271 = scalar_lea.vmem %s0, %s270
        %v272 = vld [vmem:[%s1] sm:$0xff]
        %v273 = vld [vmem:[%s1 + $0x8] sm:$0xff]
        %v274 = vld [vmem:[%s1 + $0x10] sm:$0xff]
        %v275 = vld [vmem:[%s1 + $0x18] sm:$0xff]
        %v276 = vld [vmem:[%s1 + $0x20] sm:$0xff]
        %v277 = vld [vmem:[%s1 + $0x28] sm:$0xff]
        %v278 = vld [vmem:[%s1 + $0x30] sm:$0xff]
        %v279 = vld [vmem:[%s1 + $0x38] sm:$0xff]
        %v280 = vld [vmem:[%s2] sm:$0xff]
        %v281 = vld [vmem:[%s2 + $0x8] sm:$0xff]
        %v282 = vld [vmem:[%s2 + $0x10] sm:$0xff]
        %v283 = vld [vmem:[%s2 + $0x18] sm:$0xff]
        %v284 = vld [vmem:[%s2 + $0x20] sm:$0xff]
        %v285 = vld [vmem:[%s2 + $0x28] sm:$0xff]
        %v286 = vld [vmem:[%s2 + $0x30] sm:$0xff]
        %v287 = vld [vmem:[%s2 + $0x38] sm:$0xff]
        %v288 = vld [vmem:[%s3] sm:$0xff]
        %v289 = vld [vmem:[%s3 + $0x8] sm:$0xff]
        %v290 = vld [vmem:[%s3 + $0x10] sm:$0xff]
        %v291 = vld [vmem:[%s3 + $0x18] sm:$0xff]
        %v292 = vld [vmem:[%s3 + $0x20] sm:$0xff]
        %v293 = vld [vmem:[%s3 + $0x28] sm:$0xff]
        %v294 = vld [vmem:[%s3 + $0x30] sm:$0xff]
        %v295 = vld [vmem:[%s3 + $0x38] sm:$0xff]
        %v296 = vld [vmem:[%s4] sm:$0xff]
        %v297 = vld [vmem:[%s4 + $0x8] sm:$0xff]
        %v298 = vld [vmem:[%s4 + $0x10] sm:$0xff]
        %v299 = vld [vmem:[%s4 + $0x18] sm:$0xff]
        %v300 = vld [vmem:[%s4 + $0x20] sm:$0xff]
        %v301 = vld [vmem:[%s4 + $0x28] sm:$0xff]
        %v302 = vld [vmem:[%s4 + $0x30] sm:$0xff]
        %v303 = vld [vmem:[%s4 + $0x38] sm:$0xff]
        %v304 = vld [vmem:[%s5] sm:$0x1]
        %v305 = vld [vmem:[#allocation2] sm:$0x1]
        %v306 = vld [vmem:[%s271] sm:$0x1]
        %308 = vset.pattern.permute.xlu0 0
        %309 = vperm.xlu0 %308, %v272
        %v310 = vpop.permute.xlu0 %309
        %313 = vset.pattern.permute.xlu0 0
        %314 = vperm.xlu0 %313, %v273
        %v315 = vpop.permute.xlu0 %314
        %318 = vset.pattern.permute.xlu0 0
        %319 = vperm.xlu0 %318, %v274
        %v320 = vpop.permute.xlu0 %319
        %323 = vset.pattern.permute.xlu0 0
        %324 = vperm.xlu0 %323, %v275
        %v325 = vpop.permute.xlu0 %324
        %328 = vset.pattern.permute.xlu0 0
        %329 = vperm.xlu0 %328, %v276
        %v330 = vpop.permute.xlu0 %329
        %333 = vset.pattern.permute.xlu0 0
        %334 = vperm.xlu0 %333, %v277
        %v335 = vpop.permute.xlu0 %334
        %338 = vset.pattern.permute.xlu0 0
        %339 = vperm.xlu0 %338, %v278
        %v340 = vpop.permute.xlu0 %339
        %343 = vset.pattern.permute.xlu0 0
        %344 = vperm.xlu0 %343, %v279
        %v345 = vpop.permute.xlu0 %344
        %v348 = vperm.slane %v306, 0
        %v350 = vmul.f32 %v310, %v348
        %v351 = vmul.f32 %v315, %v348
        %v352 = vmul.f32 %v320, %v348
        %v353 = vmul.f32 %v325, %v348
        %v354 = vmul.f32 %v330, %v348
        %v355 = vmul.f32 %v335, %v348
        %v356 = vmul.f32 %v340, %v348
        %v357 = vmul.f32 %v345, %v348
        %359 = vset.pattern.permute.xlu0 0
        %360 = vperm.xlu0 %359, %v280
        %v361 = vpop.permute.xlu0 %360
        %364 = vset.pattern.permute.xlu0 0
        %365 = vperm.xlu0 %364, %v281
        %v366 = vpop.permute.xlu0 %365
        %369 = vset.pattern.permute.xlu0 0
        %370 = vperm.xlu0 %369, %v282
        %v371 = vpop.permute.xlu0 %370
        %374 = vset.pattern.permute.xlu0 0
        %375 = vperm.xlu0 %374, %v283
        %v376 = vpop.permute.xlu0 %375
        %379 = vset.pattern.permute.xlu0 0
        %380 = vperm.xlu0 %379, %v284
        %v381 = vpop.permute.xlu0 %380
        %384 = vset.pattern.permute.xlu0 0
        %385 = vperm.xlu0 %384, %v285
        %v386 = vpop.permute.xlu0 %385
        %389 = vset.pattern.permute.xlu0 0
        %390 = vperm.xlu0 %389, %v286
        %v391 = vpop.permute.xlu0 %390
        %394 = vset.pattern.permute.xlu0 0
        %395 = vperm.xlu0 %394, %v287
        %v396 = vpop.permute.xlu0 %395
        %v398 = vadd.f32 %v350, %v361
        %v399 = vadd.f32 %v351, %v366
        %v400 = vadd.f32 %v352, %v371
        %v401 = vadd.f32 %v353, %v376
        %v402 = vadd.f32 %v354, %v381
        %v403 = vadd.f32 %v355, %v386
        %v404 = vadd.f32 %v356, %v391
        %v405 = vadd.f32 %v357, %v396
        %v406 = vmax.f32 %v398, 0.0
        %v407 = vmax.f32 %v399, 0.0
        %v408 = vmax.f32 %v400, 0.0
        %v409 = vmax.f32 %v401, 0.0
        %v410 = vmax.f32 %v402, 0.0
        %v411 = vmax.f32 %v403, 0.0
        %v412 = vmax.f32 %v404, 0.0
        %v413 = vmax.f32 %v405, 0.0
        %415 = vset.pattern.permute.xlu0 0
        %416 = vperm.xlu0 %415, %v296
        %v417 = vpop.permute.xlu0 %416
        %420 = vset.pattern.permute.xlu0 0
        %421 = vperm.xlu0 %420, %v297
        %v422 = vpop.permute.xlu0 %421
        %425 = vset.pattern.permute.xlu0 0
        %426 = vperm.xlu0 %425, %v298
        %v427 = vpop.permute.xlu0 %426
        %430 = vset.pattern.permute.xlu0 0
        %431 = vperm.xlu0 %430, %v299
        %v432 = vpop.permute.xlu0 %431
        %435 = vset.pattern.permute.xlu0 0
        %436 = vperm.xlu0 %435, %v300
        %v437 = vpop.permute.xlu0 %436
        %440 = vset.pattern.permute.xlu0 0
        %441 = vperm.xlu0 %440, %v301
        %v442 = vpop.permute.xlu0 %441
        %445 = vset.pattern.permute.xlu0 0
        %446 = vperm.xlu0 %445, %v302
        %v447 = vpop.permute.xlu0 %446
        %450 = vset.pattern.permute.xlu0 0
        %451 = vperm.xlu0 %450, %v303
        %v452 = vpop.permute.xlu0 %451
        %vm454 = vcmask 523264
        %v456 = vsel %vm454, %v288, 0
        %v459 = vsel %vm454, %v289, 0
        %v462 = vsel %vm454, %v290, 0
        %v465 = vsel %vm454, %v291, 0
        %v468 = vsel %vm454, %v292, 0
        %v471 = vsel %vm454, %v293, 0
        %v474 = vsel %vm454, %v294, 0
        %v477 = vsel %vm454, %v295, 0
        %479 = vmatpush.msra.mxu0 0.0
        %480 = vmatpush.msra.mxu0 0.0
        %481 = vmatpush.msra.mxu0 0.0
        %482 = vmatpush.msra.mxu0 0.0
        %483 = vmatpush.msra.mxu0 0.0
        %484 = vmatpush.msra.mxu0 0.0
        %485 = vmatpush.msra.mxu0 0.0
        %486 = vmatpush.msra.mxu0 0.0
        %v487 = vand.u32 %v413, 4294901760
        %488 = vmatpush.msra.mxu0 %v487
        %v489 = vand.u32 %v412, 4294901760
        %490 = vmatpush.msra.mxu0 %v489
        %v491 = vand.u32 %v411, 4294901760
        %492 = vmatpush.msra.mxu0 %v491
        %v493 = vand.u32 %v410, 4294901760
        %494 = vmatpush.msra.mxu0 %v493
        %v495 = vand.u32 %v409, 4294901760
        %496 = vmatpush.msra.mxu0 %v495
        %v497 = vand.u32 %v408, 4294901760
        %498 = vmatpush.msra.mxu0 %v497
        %v499 = vand.u32 %v407, 4294901760
        %500 = vmatpush.msra.mxu0 %v499
        %v501 = vand.u32 %v406, 4294901760
        %502 = vmatpush.msra.mxu0 %v501
        %v503 = vand.u32 %v456, 4294901760
        %v504 = vsub.f32 %v456, %v503
        %v505 = vand.u32 %v504, 4294901760
        %v506 = vsub.f32 %v504, %v505
        %v507 = vand.u32 %v506, 4294901760
        %508 = vmatmul.f32.gmra.mxu0 %v507
        %v509 = vpop.f32.mrf.mxu0
        %v510 = vadd.f32 %v417, %v509
        %v511 = vand.u32 %v459, 4294901760
        %v512 = vsub.f32 %v459, %v511
        %v513 = vand.u32 %v512, 4294901760
        %v514 = vsub.f32 %v512, %v513
        %v515 = vand.u32 %v514, 4294901760
        %516 = vmatmul.f32.gmra.mxu0 %v515
        %v517 = vpop.f32.mrf.mxu0
        %v518 = vadd.f32 %v422, %v517
        %v519 = vand.u32 %v462, 4294901760
        %v520 = vsub.f32 %v462, %v519
        %v521 = vand.u32 %v520, 4294901760
        %v522 = vsub.f32 %v520, %v521
        %v523 = vand.u32 %v522, 4294901760
        %524 = vmatmul.f32.gmra.mxu0 %v523
        %v525 = vpop.f32.mrf.mxu0
        %v526 = vadd.f32 %v427, %v525
        %v527 = vand.u32 %v465, 4294901760
        %v528 = vsub.f32 %v465, %v527
        %v529 = vand.u32 %v528, 4294901760
        %v530 = vsub.f32 %v528, %v529
        %v531 = vand.u32 %v530, 4294901760
        %532 = vmatmul.f32.gmra.mxu0 %v531
        %v533 = vpop.f32.mrf.mxu0
        %v534 = vadd.f32 %v432, %v533
        %v535 = vand.u32 %v468, 4294901760
        %v536 = vsub.f32 %v468, %v535
        %v537 = vand.u32 %v536, 4294901760
        %v538 = vsub.f32 %v536, %v537
        %v539 = vand.u32 %v538, 4294901760
        %540 = vmatmul.f32.gmra.mxu0 %v539
        %v541 = vpop.f32.mrf.mxu0
        %v542 = vadd.f32 %v437, %v541
        %v543 = vand.u32 %v471, 4294901760
        %v544 = vsub.f32 %v471, %v543
        %v545 = vand.u32 %v544, 4294901760
        %v546 = vsub.f32 %v544, %v545
        %v547 = vand.u32 %v546, 4294901760
        %548 = vmatmul.f32.gmra.mxu0 %v547
        %v549 = vpop.f32.mrf.mxu0
        %v550 = vadd.f32 %v442, %v549
        %v551 = vand.u32 %v474, 4294901760
        %v552 = vsub.f32 %v474, %v551
        %v553 = vand.u32 %v552, 4294901760
        %v554 = vsub.f32 %v552, %v553
        %v555 = vand.u32 %v554, 4294901760
        %556 = vmatmul.f32.gmra.mxu0 %v555
        %v557 = vpop.f32.mrf.mxu0
        %v558 = vadd.f32 %v447, %v557
        %v559 = vand.u32 %v477, 4294901760
        %v560 = vsub.f32 %v477, %v559
        %v561 = vand.u32 %v560, 4294901760
        %v562 = vsub.f32 %v560, %v561
        %v563 = vand.u32 %v562, 4294901760
        %564 = vmatmul.f32.gmra.mxu0 %v563
        %v565 = vpop.f32.mrf.mxu0
        %v566 = vadd.f32 %v452, %v565
        %567 = vdwg.mxu0
        %568 = vmatpush.msra.mxu0 0.0
        %569 = vmatpush.msra.mxu0 0.0
        %570 = vmatpush.msra.mxu0 0.0
        %571 = vmatpush.msra.mxu0 0.0
        %572 = vmatpush.msra.mxu0 0.0
        %573 = vmatpush.msra.mxu0 0.0
        %574 = vmatpush.msra.mxu0 0.0
        %575 = vmatpush.msra.mxu0 0.0
        %v576 = vand.u32 %v413, 4294901760
        %v577 = vsub.f32 %v413, %v576
        %v578 = vand.u32 %v577, 4294901760
        %v579 = vsub.f32 %v577, %v578
        %v580 = vand.u32 %v579, 4294901760
        %581 = vmatpush.msra.mxu0 %v580
        %v582 = vand.u32 %v412, 4294901760
        %v583 = vsub.f32 %v412, %v582
        %v584 = vand.u32 %v583, 4294901760
        %v585 = vsub.f32 %v583, %v584
        %v586 = vand.u32 %v585, 4294901760
        %587 = vmatpush.msra.mxu0 %v586
        %v588 = vand.u32 %v411, 4294901760
        %v589 = vsub.f32 %v411, %v588
        %v590 = vand.u32 %v589, 4294901760
        %v591 = vsub.f32 %v589, %v590
        %v592 = vand.u32 %v591, 4294901760
        %593 = vmatpush.msra.mxu0 %v592
        %v594 = vand.u32 %v410, 4294901760
        %v595 = vsub.f32 %v410, %v594
        %v596 = vand.u32 %v595, 4294901760
        %v597 = vsub.f32 %v595, %v596
        %v598 = vand.u32 %v597, 4294901760
        %599 = vmatpush.msra.mxu0 %v598
        %v600 = vand.u32 %v409, 4294901760
        %v601 = vsub.f32 %v409, %v600
        %v602 = vand.u32 %v601, 4294901760
        %v603 = vsub.f32 %v601, %v602
        %v604 = vand.u32 %v603, 4294901760
        %605 = vmatpush.msra.mxu0 %v604
        %v606 = vand.u32 %v408, 4294901760
        %v607 = vsub.f32 %v408, %v606
        %v608 = vand.u32 %v607, 4294901760
        %v609 = vsub.f32 %v607, %v608
        %v610 = vand.u32 %v609, 4294901760
        %611 = vmatpush.msra.mxu0 %v610
        %v612 = vand.u32 %v407, 4294901760
        %v613 = vsub.f32 %v407, %v612
        %v614 = vand.u32 %v613, 4294901760
        %v615 = vsub.f32 %v613, %v614
        %v616 = vand.u32 %v615, 4294901760
        %617 = vmatpush.msra.mxu0 %v616
        %v618 = vand.u32 %v406, 4294901760
        %v619 = vsub.f32 %v406, %v618
        %v620 = vand.u32 %v619, 4294901760
        %v621 = vsub.f32 %v619, %v620
        %v622 = vand.u32 %v621, 4294901760
        %623 = vmatpush.msra.mxu0 %v622
        %v624 = vand.u32 %v456, 4294901760
        %625 = vmatmul.f32.gmra.mxu0 %v624
        %v626 = vpop.f32.mrf.mxu0
        %v627 = vadd.f32 %v510, %v626
        %v628 = vand.u32 %v459, 4294901760
        %629 = vmatmul.f32.gmra.mxu0 %v628
        %v630 = vpop.f32.mrf.mxu0
        %v631 = vadd.f32 %v518, %v630
        %v632 = vand.u32 %v462, 4294901760
        %633 = vmatmul.f32.gmra.mxu0 %v632
        %v634 = vpop.f32.mrf.mxu0
        %v635 = vadd.f32 %v526, %v634
        %v636 = vand.u32 %v465, 4294901760
        %637 = vmatmul.f32.gmra.mxu0 %v636
        %v638 = vpop.f32.mrf.mxu0
        %v639 = vadd.f32 %v534, %v638
        %v640 = vand.u32 %v468, 4294901760
        %641 = vmatmul.f32.gmra.mxu0 %v640
        %v642 = vpop.f32.mrf.mxu0
        %v643 = vadd.f32 %v542, %v642
        %v644 = vand.u32 %v471, 4294901760
        %645 = vmatmul.f32.gmra.mxu0 %v644
        %v646 = vpop.f32.mrf.mxu0
        %v647 = vadd.f32 %v550, %v646
        %v648 = vand.u32 %v474, 4294901760
        %649 = vmatmul.f32.gmra.mxu0 %v648
        %v650 = vpop.f32.mrf.mxu0
        %v651 = vadd.f32 %v558, %v650
        %v652 = vand.u32 %v477, 4294901760
        %653 = vmatmul.f32.gmra.mxu0 %v652
        %v654 = vpop.f32.mrf.mxu0
        %v655 = vadd.f32 %v566, %v654
        %656 = vdwg.mxu0
        %657 = vmatpush.msra.mxu0 0.0
        %658 = vmatpush.msra.mxu0 0.0
        %659 = vmatpush.msra.mxu0 0.0
        %660 = vmatpush.msra.mxu0 0.0
        %661 = vmatpush.msra.mxu0 0.0
        %662 = vmatpush.msra.mxu0 0.0
        %663 = vmatpush.msra.mxu0 0.0
        %664 = vmatpush.msra.mxu0 0.0
        %v665 = vand.u32 %v413, 4294901760
        %v666 = vsub.f32 %v413, %v665
        %667 = vmatpush.msra.mxu0 %v666
        %v668 = vand.u32 %v412, 4294901760
        %v669 = vsub.f32 %v412, %v668
        %670 = vmatpush.msra.mxu0 %v669
        %v671 = vand.u32 %v411, 4294901760
        %v672 = vsub.f32 %v411, %v671
        %673 = vmatpush.msra.mxu0 %v672
        %v674 = vand.u32 %v410, 4294901760
        %v675 = vsub.f32 %v410, %v674
        %676 = vmatpush.msra.mxu0 %v675
        %v677 = vand.u32 %v409, 4294901760
        %v678 = vsub.f32 %v409, %v677
        %679 = vmatpush.msra.mxu0 %v678
        %v680 = vand.u32 %v408, 4294901760
        %v681 = vsub.f32 %v408, %v680
        %682 = vmatpush.msra.mxu0 %v681
        %v683 = vand.u32 %v407, 4294901760
        %v684 = vsub.f32 %v407, %v683
        %685 = vmatpush.msra.mxu0 %v684
        %v686 = vand.u32 %v406, 4294901760
        %v687 = vsub.f32 %v406, %v686
        %688 = vmatpush.msra.mxu0 %v687
        %v689 = vand.u32 %v456, 4294901760
        %v690 = vsub.f32 %v456, %v689
        %691 = vmatmul.f32.gmra.mxu0 %v690
        %v692 = vpop.f32.mrf.mxu0
        %v693 = vadd.f32 %v627, %v692
        %v694 = vand.u32 %v459, 4294901760
        %v695 = vsub.f32 %v459, %v694
        %696 = vmatmul.f32.gmra.mxu0 %v695
        %v697 = vpop.f32.mrf.mxu0
        %v698 = vadd.f32 %v631, %v697
        %v699 = vand.u32 %v462, 4294901760
        %v700 = vsub.f32 %v462, %v699
        %701 = vmatmul.f32.gmra.mxu0 %v700
        %v702 = vpop.f32.mrf.mxu0
        %v703 = vadd.f32 %v635, %v702
        %v704 = vand.u32 %v465, 4294901760
        %v705 = vsub.f32 %v465, %v704
        %706 = vmatmul.f32.gmra.mxu0 %v705
        %v707 = vpop.f32.mrf.mxu0
        %v708 = vadd.f32 %v639, %v707
        %v709 = vand.u32 %v468, 4294901760
        %v710 = vsub.f32 %v468, %v709
        %711 = vmatmul.f32.gmra.mxu0 %v710
        %v712 = vpop.f32.mrf.mxu0
        %v713 = vadd.f32 %v643, %v712
        %v714 = vand.u32 %v471, 4294901760
        %v715 = vsub.f32 %v471, %v714
        %716 = vmatmul.f32.gmra.mxu0 %v715
        %v717 = vpop.f32.mrf.mxu0
        %v718 = vadd.f32 %v647, %v717
        %v719 = vand.u32 %v474, 4294901760
        %v720 = vsub.f32 %v474, %v719
        %721 = vmatmul.f32.gmra.mxu0 %v720
        %v722 = vpop.f32.mrf.mxu0
        %v723 = vadd.f32 %v651, %v722
        %v724 = vand.u32 %v477, 4294901760
        %v725 = vsub.f32 %v477, %v724
        %726 = vmatmul.f32.gmra.mxu0 %v725
        %v727 = vpop.f32.mrf.mxu0
        %v728 = vadd.f32 %v655, %v727
        %729 = vdwg.mxu0
        %730 = vmatpush.msra.mxu0 0.0
        %731 = vmatpush.msra.mxu0 0.0
        %732 = vmatpush.msra.mxu0 0.0
        %733 = vmatpush.msra.mxu0 0.0
        %734 = vmatpush.msra.mxu0 0.0
        %735 = vmatpush.msra.mxu0 0.0
        %736 = vmatpush.msra.mxu0 0.0
        %737 = vmatpush.msra.mxu0 0.0
        %v738 = vand.u32 %v413, 4294901760
        %739 = vmatpush.msra.mxu0 %v738
        %v740 = vand.u32 %v412, 4294901760
        %741 = vmatpush.msra.mxu0 %v740
        %v742 = vand.u32 %v411, 4294901760
        %743 = vmatpush.msra.mxu0 %v742
        %v744 = vand.u32 %v410, 4294901760
        %745 = vmatpush.msra.mxu0 %v744
        %v746 = vand.u32 %v409, 4294901760
        %747 = vmatpush.msra.mxu0 %v746
        %v748 = vand.u32 %v408, 4294901760
        %749 = vmatpush.msra.mxu0 %v748
        %v750 = vand.u32 %v407, 4294901760
        %751 = vmatpush.msra.mxu0 %v750
        %v752 = vand.u32 %v406, 4294901760
        %753 = vmatpush.msra.mxu0 %v752
        %v754 = vand.u32 %v456, 4294901760
        %v755 = vsub.f32 %v456, %v754
        %v756 = vand.u32 %v755, 4294901760
        %757 = vmatmul.f32.gmra.mxu0 %v756
        %v758 = vpop.f32.mrf.mxu0
        %v759 = vadd.f32 %v693, %v758
        %v760 = vand.u32 %v459, 4294901760
        %v761 = vsub.f32 %v459, %v760
        %v762 = vand.u32 %v761, 4294901760
        %763 = vmatmul.f32.gmra.mxu0 %v762
        %v764 = vpop.f32.mrf.mxu0
        %v765 = vadd.f32 %v698, %v764
        %v766 = vand.u32 %v462, 4294901760
        %v767 = vsub.f32 %v462, %v766
        %v768 = vand.u32 %v767, 4294901760
        %769 = vmatmul.f32.gmra.mxu0 %v768
        %v770 = vpop.f32.mrf.mxu0
        %v771 = vadd.f32 %v703, %v770
        %v772 = vand.u32 %v465, 4294901760
        %v773 = vsub.f32 %v465, %v772
        %v774 = vand.u32 %v773, 4294901760
        %775 = vmatmul.f32.gmra.mxu0 %v774
        %v776 = vpop.f32.mrf.mxu0
        %v777 = vadd.f32 %v708, %v776
        %v778 = vand.u32 %v468, 4294901760
        %v779 = vsub.f32 %v468, %v778
        %v780 = vand.u32 %v779, 4294901760
        %781 = vmatmul.f32.gmra.mxu0 %v780
        %v782 = vpop.f32.mrf.mxu0
        %v783 = vadd.f32 %v713, %v782
        %v784 = vand.u32 %v471, 4294901760
        %v785 = vsub.f32 %v471, %v784
        %v786 = vand.u32 %v785, 4294901760
        %787 = vmatmul.f32.gmra.mxu0 %v786
        %v788 = vpop.f32.mrf.mxu0
        %v789 = vadd.f32 %v718, %v788
        %v790 = vand.u32 %v474, 4294901760
        %v791 = vsub.f32 %v474, %v790
        %v792 = vand.u32 %v791, 4294901760
        %793 = vmatmul.f32.gmra.mxu0 %v792
        %v794 = vpop.f32.mrf.mxu0
        %v795 = vadd.f32 %v723, %v794
        %v796 = vand.u32 %v477, 4294901760
        %v797 = vsub.f32 %v477, %v796
        %v798 = vand.u32 %v797, 4294901760
        %799 = vmatmul.f32.gmra.mxu0 %v798
        %v800 = vpop.f32.mrf.mxu0
        %v801 = vadd.f32 %v728, %v800
        %802 = vdwg.mxu0
        %803 = vmatpush.msra.mxu0 0.0
        %804 = vmatpush.msra.mxu0 0.0
        %805 = vmatpush.msra.mxu0 0.0
        %806 = vmatpush.msra.mxu0 0.0
        %807 = vmatpush.msra.mxu0 0.0
        %808 = vmatpush.msra.mxu0 0.0
        %809 = vmatpush.msra.mxu0 0.0
        %810 = vmatpush.msra.mxu0 0.0
        %v811 = vand.u32 %v413, 4294901760
        %v812 = vsub.f32 %v413, %v811
        %v813 = vand.u32 %v812, 4294901760
        %814 = vmatpush.msra.mxu0 %v813
        %v815 = vand.u32 %v412, 4294901760
        %v816 = vsub.f32 %v412, %v815
        %v817 = vand.u32 %v816, 4294901760
        %818 = vmatpush.msra.mxu0 %v817
        %v819 = vand.u32 %v411, 4294901760
        %v820 = vsub.f32 %v411, %v819
        %v821 = vand.u32 %v820, 4294901760
        %822 = vmatpush.msra.mxu0 %v821
        %v823 = vand.u32 %v410, 4294901760
        %v824 = vsub.f32 %v410, %v823
        %v825 = vand.u32 %v824, 4294901760
        %826 = vmatpush.msra.mxu0 %v825
        %v827 = vand.u32 %v409, 4294901760
        %v828 = vsub.f32 %v409, %v827
        %v829 = vand.u32 %v828, 4294901760
        %830 = vmatpush.msra.mxu0 %v829
        %v831 = vand.u32 %v408, 4294901760
        %v832 = vsub.f32 %v408, %v831
        %v833 = vand.u32 %v832, 4294901760
        %834 = vmatpush.msra.mxu0 %v833
        %v835 = vand.u32 %v407, 4294901760
        %v836 = vsub.f32 %v407, %v835
        %v837 = vand.u32 %v836, 4294901760
        %838 = vmatpush.msra.mxu0 %v837
        %v839 = vand.u32 %v406, 4294901760
        %v840 = vsub.f32 %v406, %v839
        %v841 = vand.u32 %v840, 4294901760
        %842 = vmatpush.msra.mxu0 %v841
        %v843 = vand.u32 %v456, 4294901760
        %844 = vmatmul.f32.gmra.mxu0 %v843
        %v845 = vpop.f32.mrf.mxu0
        %v846 = vadd.f32 %v759, %v845
        %v847 = vand.u32 %v459, 4294901760
        %848 = vmatmul.f32.gmra.mxu0 %v847
        %v849 = vpop.f32.mrf.mxu0
        %v850 = vadd.f32 %v765, %v849
        %v851 = vand.u32 %v462, 4294901760
        %852 = vmatmul.f32.gmra.mxu0 %v851
        %v853 = vpop.f32.mrf.mxu0
        %v854 = vadd.f32 %v771, %v853
        %v855 = vand.u32 %v465, 4294901760
        %856 = vmatmul.f32.gmra.mxu0 %v855
        %v857 = vpop.f32.mrf.mxu0
        %v858 = vadd.f32 %v777, %v857
        %v859 = vand.u32 %v468, 4294901760
        %860 = vmatmul.f32.gmra.mxu0 %v859
        %v861 = vpop.f32.mrf.mxu0
        %v862 = vadd.f32 %v783, %v861
        %v863 = vand.u32 %v471, 4294901760
        %864 = vmatmul.f32.gmra.mxu0 %v863
        %v865 = vpop.f32.mrf.mxu0
        %v866 = vadd.f32 %v789, %v865
        %v867 = vand.u32 %v474, 4294901760
        %868 = vmatmul.f32.gmra.mxu0 %v867
        %v869 = vpop.f32.mrf.mxu0
        %v870 = vadd.f32 %v795, %v869
        %v871 = vand.u32 %v477, 4294901760
        %872 = vmatmul.f32.gmra.mxu0 %v871
        %v873 = vpop.f32.mrf.mxu0
        %v874 = vadd.f32 %v801, %v873
        %875 = vdwg.mxu0
        %876 = vmatpush.msra.mxu0 0.0
        %877 = vmatpush.msra.mxu0 0.0
        %878 = vmatpush.msra.mxu0 0.0
        %879 = vmatpush.msra.mxu0 0.0
        %880 = vmatpush.msra.mxu0 0.0
        %881 = vmatpush.msra.mxu0 0.0
        %882 = vmatpush.msra.mxu0 0.0
        %883 = vmatpush.msra.mxu0 0.0
        %v884 = vand.u32 %v413, 4294901760
        %885 = vmatpush.msra.mxu0 %v884
        %v886 = vand.u32 %v412, 4294901760
        %887 = vmatpush.msra.mxu0 %v886
        %v888 = vand.u32 %v411, 4294901760
        %889 = vmatpush.msra.mxu0 %v888
        %v890 = vand.u32 %v410, 4294901760
        %891 = vmatpush.msra.mxu0 %v890
        %v892 = vand.u32 %v409, 4294901760
        %893 = vmatpush.msra.mxu0 %v892
        %v894 = vand.u32 %v408, 4294901760
        %895 = vmatpush.msra.mxu0 %v894
        %v896 = vand.u32 %v407, 4294901760
        %897 = vmatpush.msra.mxu0 %v896
        %v898 = vand.u32 %v406, 4294901760
        %899 = vmatpush.msra.mxu0 %v898
        %v900 = vand.u32 %v456, 4294901760
        %901 = vmatmul.f32.gmra.mxu0 %v900
        %v902 = vpop.f32.mrf.mxu0
        %v903 = vadd.f32 %v846, %v902
        %v904 = vand.u32 %v459, 4294901760
        %905 = vmatmul.f32.gmra.mxu0 %v904
        %v906 = vpop.f32.mrf.mxu0
        %v907 = vadd.f32 %v850, %v906
        %v908 = vand.u32 %v462, 4294901760
        %909 = vmatmul.f32.gmra.mxu0 %v908
        %v910 = vpop.f32.mrf.mxu0
        %v911 = vadd.f32 %v854, %v910
        %v912 = vand.u32 %v465, 4294901760
        %913 = vmatmul.f32.gmra.mxu0 %v912
        %v914 = vpop.f32.mrf.mxu0
        %v915 = vadd.f32 %v858, %v914
        %v916 = vand.u32 %v468, 4294901760
        %917 = vmatmul.f32.gmra.mxu0 %v916
        %v918 = vpop.f32.mrf.mxu0
        %v919 = vadd.f32 %v862, %v918
        %v920 = vand.u32 %v471, 4294901760
        %921 = vmatmul.f32.gmra.mxu0 %v920
        %v922 = vpop.f32.mrf.mxu0
        %v923 = vadd.f32 %v866, %v922
        %v924 = vand.u32 %v474, 4294901760
        %925 = vmatmul.f32.gmra.mxu0 %v924
        %v926 = vpop.f32.mrf.mxu0
        %v927 = vadd.f32 %v870, %v926
        %v928 = vand.u32 %v477, 4294901760
        %929 = vmatmul.f32.gmra.mxu0 %v928
        %v930 = vpop.f32.mrf.mxu0
        %v931 = vadd.f32 %v874, %v930
        %932 = vdwg.mxu0
        %v933 = vmax.f32 %v903, 0.0
        %v934 = vmax.f32 %v907, 0.0
        %v935 = vmax.f32 %v911, 0.0
        %v936 = vmax.f32 %v915, 0.0
        %v937 = vmax.f32 %v919, 0.0
        %v938 = vmax.f32 %v923, 0.0
        %v939 = vmax.f32 %v927, 0.0
        %v940 = vmax.f32 %v931, 0.0
        %942 = vset.pattern.permute.xlu0 0
        %943 = vperm.xlu0 %942, %v305
        %v944 = vpop.permute.xlu0 %943
        %v946 = vperm.slane %v944, 0
        %v948 = vsel %vm454, %v304, 0
        %950 = vmatpush.msra.mxu0 0.0
        %951 = vmatpush.msra.mxu0 0.0
        %952 = vmatpush.msra.mxu0 0.0
        %953 = vmatpush.msra.mxu0 0.0
        %954 = vmatpush.msra.mxu0 0.0
        %955 = vmatpush.msra.mxu0 0.0
        %956 = vmatpush.msra.mxu0 0.0
        %957 = vmatpush.msra.mxu0 0.0
        %v958 = vand.u32 %v940, 4294901760
        %959 = vmatpush.msra.mxu0 %v958
        %v960 = vand.u32 %v939, 4294901760
        %961 = vmatpush.msra.mxu0 %v960
        %v962 = vand.u32 %v938, 4294901760
        %963 = vmatpush.msra.mxu0 %v962
        %v964 = vand.u32 %v937, 4294901760
        %965 = vmatpush.msra.mxu0 %v964
        %v966 = vand.u32 %v936, 4294901760
        %967 = vmatpush.msra.mxu0 %v966
        %v968 = vand.u32 %v935, 4294901760
        %969 = vmatpush.msra.mxu0 %v968
        %v970 = vand.u32 %v934, 4294901760
        %971 = vmatpush.msra.mxu0 %v970
        %v972 = vand.u32 %v933, 4294901760
        %973 = vmatpush.msra.mxu0 %v972
        %v974 = vand.u32 %v948, 4294901760
        %v975 = vsub.f32 %v948, %v974
        %v976 = vand.u32 %v975, 4294901760
        %v977 = vsub.f32 %v975, %v976
        %v978 = vand.u32 %v977, 4294901760
        %979 = vmatmul.f32.gmra.mxu0 %v978
        %v980 = vpop.f32.mrf.mxu0
        %v981 = vadd.f32 %v946, %v980
        %982 = vdwg.mxu0
        %983 = vmatpush.msra.mxu0 0.0
        %984 = vmatpush.msra.mxu0 0.0
        %985 = vmatpush.msra.mxu0 0.0
        %986 = vmatpush.msra.mxu0 0.0
        %987 = vmatpush.msra.mxu0 0.0
        %988 = vmatpush.msra.mxu0 0.0
        %989 = vmatpush.msra.mxu0 0.0
        %990 = vmatpush.msra.mxu0 0.0
        %v991 = vand.u32 %v940, 4294901760
        %v992 = vsub.f32 %v940, %v991
        %v993 = vand.u32 %v992, 4294901760
        %v994 = vsub.f32 %v992, %v993
        %v995 = vand.u32 %v994, 4294901760
        %996 = vmatpush.msra.mxu0 %v995
        %v997 = vand.u32 %v939, 4294901760
        %v998 = vsub.f32 %v939, %v997
        %v999 = vand.u32 %v998, 4294901760
        %v1000 = vsub.f32 %v998, %v999
        %v1001 = vand.u32 %v1000, 4294901760
        %1002 = vmatpush.msra.mxu0 %v1001
        %v1003 = vand.u32 %v938, 4294901760
        %v1004 = vsub.f32 %v938, %v1003
        %v1005 = vand.u32 %v1004, 4294901760
        %v1006 = vsub.f32 %v1004, %v1005
        %v1007 = vand.u32 %v1006, 4294901760
        %1008 = vmatpush.msra.mxu0 %v1007
        %v1009 = vand.u32 %v937, 4294901760
        %v1010 = vsub.f32 %v937, %v1009
        %v1011 = vand.u32 %v1010, 4294901760
        %v1012 = vsub.f32 %v1010, %v1011
        %v1013 = vand.u32 %v1012, 4294901760
        %1014 = vmatpush.msra.mxu0 %v1013
        %v1015 = vand.u32 %v936, 4294901760
        %v1016 = vsub.f32 %v936, %v1015
        %v1017 = vand.u32 %v1016, 4294901760
        %v1018 = vsub.f32 %v1016, %v1017
        %v1019 = vand.u32 %v1018, 4294901760
        %1020 = vmatpush.msra.mxu0 %v1019
        %v1021 = vand.u32 %v935, 4294901760
        %v1022 = vsub.f32 %v935, %v1021
        %v1023 = vand.u32 %v1022, 4294901760
        %v1024 = vsub.f32 %v1022, %v1023
        %v1025 = vand.u32 %v1024, 4294901760
        %1026 = vmatpush.msra.mxu0 %v1025
        %v1027 = vand.u32 %v934, 4294901760
        %v1028 = vsub.f32 %v934, %v1027
        %v1029 = vand.u32 %v1028, 4294901760
        %v1030 = vsub.f32 %v1028, %v1029
        %v1031 = vand.u32 %v1030, 4294901760
        %1032 = vmatpush.msra.mxu0 %v1031
        %v1033 = vand.u32 %v933, 4294901760
        %v1034 = vsub.f32 %v933, %v1033
        %v1035 = vand.u32 %v1034, 4294901760
        %v1036 = vsub.f32 %v1034, %v1035
        %v1037 = vand.u32 %v1036, 4294901760
        %1038 = vmatpush.msra.mxu0 %v1037
        %v1039 = vand.u32 %v948, 4294901760
        %1040 = vmatmul.f32.gmra.mxu0 %v1039
        %v1041 = vpop.f32.mrf.mxu0
        %v1042 = vadd.f32 %v981, %v1041
        %1043 = vdwg.mxu0
        %1044 = vmatpush.msra.mxu0 0.0
        %1045 = vmatpush.msra.mxu0 0.0
        %1046 = vmatpush.msra.mxu0 0.0
        %1047 = vmatpush.msra.mxu0 0.0
        %1048 = vmatpush.msra.mxu0 0.0
        %1049 = vmatpush.msra.mxu0 0.0
        %1050 = vmatpush.msra.mxu0 0.0
        %1051 = vmatpush.msra.mxu0 0.0
        %v1052 = vand.u32 %v940, 4294901760
        %v1053 = vsub.f32 %v940, %v1052
        %1054 = vmatpush.msra.mxu0 %v1053
        %v1055 = vand.u32 %v939, 4294901760
        %v1056 = vsub.f32 %v939, %v1055
        %1057 = vmatpush.msra.mxu0 %v1056
        %v1058 = vand.u32 %v938, 4294901760
        %v1059 = vsub.f32 %v938, %v1058
        %1060 = vmatpush.msra.mxu0 %v1059
        %v1061 = vand.u32 %v937, 4294901760
        %v1062 = vsub.f32 %v937, %v1061
        %1063 = vmatpush.msra.mxu0 %v1062
        %v1064 = vand.u32 %v936, 4294901760
        %v1065 = vsub.f32 %v936, %v1064
        %1066 = vmatpush.msra.mxu0 %v1065
        %v1067 = vand.u32 %v935, 4294901760
        %v1068 = vsub.f32 %v935, %v1067
        %1069 = vmatpush.msra.mxu0 %v1068
        %v1070 = vand.u32 %v934, 4294901760
        %v1071 = vsub.f32 %v934, %v1070
        %1072 = vmatpush.msra.mxu0 %v1071
        %v1073 = vand.u32 %v933, 4294901760
        %v1074 = vsub.f32 %v933, %v1073
        %1075 = vmatpush.msra.mxu0 %v1074
        %v1076 = vand.u32 %v948, 4294901760
        %v1077 = vsub.f32 %v948, %v1076
        %1078 = vmatmul.f32.gmra.mxu0 %v1077
        %v1079 = vpop.f32.mrf.mxu0
        %v1080 = vadd.f32 %v1042, %v1079
        %1081 = vdwg.mxu0
        %1082 = vmatpush.msra.mxu0 0.0
        %1083 = vmatpush.msra.mxu0 0.0
        %1084 = vmatpush.msra.mxu0 0.0
        %1085 = vmatpush.msra.mxu0 0.0
        %1086 = vmatpush.msra.mxu0 0.0
        %1087 = vmatpush.msra.mxu0 0.0
        %1088 = vmatpush.msra.mxu0 0.0
        %1089 = vmatpush.msra.mxu0 0.0
        %v1090 = vand.u32 %v940, 4294901760
        %1091 = vmatpush.msra.mxu0 %v1090
        %v1092 = vand.u32 %v939, 4294901760
        %1093 = vmatpush.msra.mxu0 %v1092
        %v1094 = vand.u32 %v938, 4294901760
        %1095 = vmatpush.msra.mxu0 %v1094
        %v1096 = vand.u32 %v937, 4294901760
        %1097 = vmatpush.msra.mxu0 %v1096
        %v1098 = vand.u32 %v936, 4294901760
        %1099 = vmatpush.msra.mxu0 %v1098
        %v1100 = vand.u32 %v935, 4294901760
        %1101 = vmatpush.msra.mxu0 %v1100
        %v1102 = vand.u32 %v934, 4294901760
        %1103 = vmatpush.msra.mxu0 %v1102
        %v1104 = vand.u32 %v933, 4294901760
        %1105 = vmatpush.msra.mxu0 %v1104
        %v1106 = vand.u32 %v948, 4294901760
        %v1107 = vsub.f32 %v948, %v1106
        %v1108 = vand.u32 %v1107, 4294901760
        %1109 = vmatmul.f32.gmra.mxu0 %v1108
        %v1110 = vpop.f32.mrf.mxu0
        %v1111 = vadd.f32 %v1080, %v1110
        %1112 = vdwg.mxu0
        %1113 = vmatpush.msra.mxu0 0.0
        %1114 = vmatpush.msra.mxu0 0.0
        %1115 = vmatpush.msra.mxu0 0.0
        %1116 = vmatpush.msra.mxu0 0.0
        %1117 = vmatpush.msra.mxu0 0.0
        %1118 = vmatpush.msra.mxu0 0.0
        %1119 = vmatpush.msra.mxu0 0.0
        %1120 = vmatpush.msra.mxu0 0.0
        %v1121 = vand.u32 %v940, 4294901760
        %v1122 = vsub.f32 %v940, %v1121
        %v1123 = vand.u32 %v1122, 4294901760
        %1124 = vmatpush.msra.mxu0 %v1123
        %v1125 = vand.u32 %v939, 4294901760
        %v1126 = vsub.f32 %v939, %v1125
        %v1127 = vand.u32 %v1126, 4294901760
        %1128 = vmatpush.msra.mxu0 %v1127
        %v1129 = vand.u32 %v938, 4294901760
        %v1130 = vsub.f32 %v938, %v1129
        %v1131 = vand.u32 %v1130, 4294901760
        %1132 = vmatpush.msra.mxu0 %v1131
        %v1133 = vand.u32 %v937, 4294901760
        %v1134 = vsub.f32 %v937, %v1133
        %v1135 = vand.u32 %v1134, 4294901760
        %1136 = vmatpush.msra.mxu0 %v1135
        %v1137 = vand.u32 %v936, 4294901760
        %v1138 = vsub.f32 %v936, %v1137
        %v1139 = vand.u32 %v1138, 4294901760
        %1140 = vmatpush.msra.mxu0 %v1139
        %v1141 = vand.u32 %v935, 4294901760
        %v1142 = vsub.f32 %v935, %v1141
        %v1143 = vand.u32 %v1142, 4294901760
        %1144 = vmatpush.msra.mxu0 %v1143
        %v1145 = vand.u32 %v934, 4294901760
        %v1146 = vsub.f32 %v934, %v1145
        %v1147 = vand.u32 %v1146, 4294901760
        %1148 = vmatpush.msra.mxu0 %v1147
        %v1149 = vand.u32 %v933, 4294901760
        %v1150 = vsub.f32 %v933, %v1149
        %v1151 = vand.u32 %v1150, 4294901760
        %1152 = vmatpush.msra.mxu0 %v1151
        %v1153 = vand.u32 %v948, 4294901760
        %1154 = vmatmul.f32.gmra.mxu0 %v1153
        %v1155 = vpop.f32.mrf.mxu0
        %v1156 = vadd.f32 %v1111, %v1155
        %1157 = vdwg.mxu0
        %1158 = vmatpush.msra.mxu0 0.0
        %1159 = vmatpush.msra.mxu0 0.0
        %1160 = vmatpush.msra.mxu0 0.0
        %1161 = vmatpush.msra.mxu0 0.0
        %1162 = vmatpush.msra.mxu0 0.0
        %1163 = vmatpush.msra.mxu0 0.0
        %1164 = vmatpush.msra.mxu0 0.0
        %1165 = vmatpush.msra.mxu0 0.0
        %v1166 = vand.u32 %v940, 4294901760
        %1167 = vmatpush.msra.mxu0 %v1166
        %v1168 = vand.u32 %v939, 4294901760
        %1169 = vmatpush.msra.mxu0 %v1168
        %v1170 = vand.u32 %v938, 4294901760
        %1171 = vmatpush.msra.mxu0 %v1170
        %v1172 = vand.u32 %v937, 4294901760
        %1173 = vmatpush.msra.mxu0 %v1172
        %v1174 = vand.u32 %v936, 4294901760
        %1175 = vmatpush.msra.mxu0 %v1174
        %v1176 = vand.u32 %v935, 4294901760
        %1177 = vmatpush.msra.mxu0 %v1176
        %v1178 = vand.u32 %v934, 4294901760
        %1179 = vmatpush.msra.mxu0 %v1178
        %v1180 = vand.u32 %v933, 4294901760
        %1181 = vmatpush.msra.mxu0 %v1180
        %v1182 = vand.u32 %v948, 4294901760
        %1183 = vmatmul.f32.gmra.mxu0 %v1182
        %v1184 = vpop.f32.mrf.mxu0
        %v1185 = vadd.f32 %v1156, %v1184
        %1186 = vdwg.mxu0
        %1187 = vst [vmem:[%s268] sm:$0x1] %v1185
        %s1188 = sand.u32 %s183, 1
        %s1189 = scalar_lea.sflag [#allocation4], %s1188
        %s1190 = sand.u32 %s183, 1
        %s1191 = scalar_lea.vmem [#allocation3], %s1190
        // Predicated region
        $region49: #{tpu_custom_call.1} parent=47 // pred_check
          %p1192 = pneg %p193
        $region50: #{tpu_custom_call.1} parent=47 // pred_check_branch
          %1194 = sbr.rel (%p1192) target = $region52
        $region51: #{tpu_custom_call.1} parent=47 // pred_region
          %1196 = vsyncadd %s1189, 0
          %s1197 = scalar_lea.hbm %s7, %s23
          %s1199 = sshll.u32 %s1191, 4
          %s1200 = int_to_ptr.vmem [resolvable:$true] %s1199
          %s1201 = sshll.u32 %s1197, 4
          %s1202 = int_to_ptr.hbm [resolvable:$true] %s1201
          %1204 = dma.vmem_to_hbm [thread:$0]  %s1200, 16, %s1202, %s1189
        $region52: #{tpu_custom_call.1} parent=47 // pred_fallthru
          _
      $region48: #{tpu_custom_call.1} parent=5 // pred_fallthru
        _
      %p1205 = scmp.le.s32.totalorder 2, %s18
      // Predicated region
      $region53: #{tpu_custom_call.1} parent=5 // pred_check
        %p1206 = pneg %p1205
      $region54: #{tpu_custom_call.1} parent=5 // pred_check_branch
        %1208 = sbr.rel (%p1206) target = $region56
      $region55: #{tpu_custom_call.1} parent=5 // pred_region
        %s1209 = ssub.s32 %s18, 2
        // Predicated region
        $region57: #{tpu_custom_call.1} parent=55 // pred_check
          %p1210 = pneg %p199
        $region58: #{tpu_custom_call.1} parent=55 // pred_check_branch
          %1212 = sbr.rel (%p1210) target = $region60
        $region59: #{tpu_custom_call.1} parent=55 // pred_region
          %s1213 = sand.u32 %s184, 1
          %s1214 = scalar_lea.sflag [#allocation4], %s1213
          %s1215 = sand.u32 %s184, 1
          %s1216 = scalar_lea.vmem [#allocation3], %s1215
          %1218 = dma.done %s1214, 16
        $region60: #{tpu_custom_call.1} parent=55 // pred_fallthru
          _
      $region56: #{tpu_custom_call.1} parent=5 // pred_fallthru
        _
    $region6: #{tpu_custom_call.1} parent=1 // loop_footer
      %s22 = sadd.s32 1, %s18
    $region7: #{tpu_custom_call.1} parent=1 // loop_footer_branch
      %17 = sbr.rel target = $region3
    $region8: #{tpu_custom_call.1} parent=1 // loop_exit
      _
    %1219 = vsyncpa [#allocation4], 1
    %s1220 = scalar_lea.sflag [#allocation4], 1
    %1221 = vsyncpa %s1220, 1

</llo_original>
